<compile_context>
chip_gen: v7x
topology: tpu7x:2x2x1
jax: 0.10.0
libtpu: 0.0.40
codegen_flags: <defaults>
</compile_context>

<pallas_src>
import jax
import jax.numpy as jnp
from jax.experimental import pallas as pl
from jax.experimental.pallas import tpu as pltpu

N = 8             # nodes_number
P = 4             # RECEIVED_PARAMS['preweight']
L1 = 32           # RECEIVED_PARAMS['layer_1']
L2 = 16           # RECEIVED_PARAMS['layer_2']
NUM_CLASSES = 1
LANE = 128
ACTIVATION = "relu"   # RECEIVED_PARAMS['activation']


def _act(v):
    if ACTIVATION == "relu":
        return jnp.maximum(v, 0.0)
    elif ACTIVATION == "elu":
        return jnp.where(v > 0, v, jnp.exp(v) - 1.0)
    else:  # 'tanh'
        return jnp.tanh(v)


def _round_up(v, m):
    return ((v + m - 1) // m) * m


def _vgs_kernel(alpha_ref, adj_ref, x_ref,
                prew_ref, preb_ref,
                w1_ref, b1_ref, w2_ref, b2_ref, w3_ref, b3_ref,
                out_ref):
    adj = adj_ref[...]          # (N, N, tb)  -- batch on lanes, nodes on sublanes
    x = x_ref[...]              # (N, tb)
    alpha = alpha_ref[0, 0]     # scalar (SMEM -> scalar ALU path)

    # --- calculate_adjacency_matrix: D^{-1/2} A D^{-1/2}, one lane per sample ---
    row_sum = jnp.sum(adj, axis=1)                           # (N, tb)
    row_sum = jnp.where(row_sum != 0.0, row_sum, 1.0)
    d = jax.lax.rsqrt(row_sum)                               # row_sum ** -0.5 (EUP)
    norm_adj = adj * d[:, None, :] * d[None, :, :]           # (N, N, tb)

    # --- einsum('ijk,ik->ij', alpha*I + A_norm, x) == A_norm@x + alpha*x ---
    y = jnp.sum(norm_adj * x[None, :, :], axis=1) + alpha * x    # (N, tb)

    # --- gcn_layer (Linear(1,P)+act) + flatten + fc1 fused ---
    # p-major slab: h[p*N + n, b] = act(y[n, b]*pre_w[p] + pre_b[p]).
    # jnp.tile along the sublane axis = whole-vreg copies (no lane traffic).
    h = _act(jnp.tile(y, (P, 1)) * prew_ref[...] + preb_ref[...])   # (P*N, tb)

    # W @ H form: MXU N-dimension carries the batch tile (>= 128 lanes).
    z1 = _act(jnp.dot(w1_ref[...], h,
                      preferred_element_type=jnp.float32) + b1_ref[...])   # (L1, tb)
    # dropout: inference mode -> identity
    z2 = _act(jnp.dot(w2_ref[...], z1,
                      preferred_element_type=jnp.float32) + b2_ref[...])   # (L2, tb)
    z3 = jnp.dot(w3_ref[...], z2,
                 preferred_element_type=jnp.float32) + b3_ref[...]         # (NUM_CLASSES, tb)

    # Packed, lane-dense store: batch on lanes, NUM_CLASSES on sublanes.
    out_ref[...] = jax.nn.sigmoid(z3)


def values_and_graph_structure(x, adj, kparams, *, tb=None):
    """x: (B, N) f32, adj: (B, N, N) f32 -> (B, NUM_CLASSES) f32."""
    b, n = x.shape
    assert n == N and adj.shape == (b, N, N)

    if tb is None:
        # Batch-last double-buffered working set ~0.64 KB/sample, so tb=4096 is
        # only ~2.6 MiB of VMEM (fits the scoped default on v5e/v6e/v7x).  For
        # b > tb the grid has >= 2 "parallel" steps -> both v7x TensorCores.
        tb = min(_round_up(max(b, 1), LANE), 4096)
    assert tb % LANE == 0
    b_pad = _round_up(b, tb)
    grid = (b_pad // tb,)

    # One-time edge transpose to the batch-last HBM layout (+ zero padding of
    # the batch tail; zero rows are neutralized by the row_sum!=0 guard).
    # Production pipelines should produce adj/x in this layout directly.
    adj_t = jnp.transpose(adj, (1, 2, 0))            # (N, N, b)
    x_t = x.T                                        # (N, b)
    if b_pad != b:
        adj_t = jnp.pad(adj_t, ((0, 0), (0, 0), (0, b_pad - b)))
        x_t = jnp.pad(x_t, ((0, 0), (0, b_pad - b)))

    def full_spec(shape):
        nd = len(shape)
        return pl.BlockSpec(shape, lambda i, _nd=nd: (0,) * _nd)

    in_specs = [
        pl.BlockSpec(memory_space=pltpu.MemorySpace.SMEM),   # alpha (1,1)
        # If a profile at large tb shows exposed DMA, add
        # pipeline_mode=pl.Buffered(3) here (VMEM headroom is ample).
        pl.BlockSpec((N, N, tb), lambda i: (0, 0, i)),       # adj (batch-last)
        pl.BlockSpec((N, tb), lambda i: (0, i)),             # x   (batch-last)
        full_spec((P * N, 1)),                               # pre_w repeated (p-major)
        full_spec((P * N, 1)),                               # pre_b repeated
        full_spec((L1, P * N)),                              # fc1 weight, p-major cols
        full_spec((L1, 1)),                                  # fc1 bias
        full_spec((L2, L1)),                                 # fc2 weight (native)
        full_spec((L2, 1)),                                  # fc2 bias
        full_spec((NUM_CLASSES, L2)),                        # fc3 weight (native)
        full_spec((NUM_CLASSES, 1)),                         # fc3 bias
    ]
    out_spec = pl.BlockSpec((NUM_CLASSES, tb), lambda i: (0, i))

    out_t = pl.pallas_call(
        _vgs_kernel,
        out_shape=jax.ShapeDtypeStruct((NUM_CLASSES, b_pad), jnp.float32),
        grid=grid,
        in_specs=in_specs,
        out_specs=out_spec,
        compiler_params=pltpu.CompilerParams(
            dimension_semantics=("parallel",)),
    )(kparams["alpha"], adj_t, x_t,
      kparams["pre_w_pm"], kparams["pre_b_pm"],
      kparams["fc1_w_pm"], kparams["fc1_b_col"],
      kparams["fc2_w"], kparams["fc2_b_col"],
      kparams["fc3_w"], kparams["fc3_b_col"])

    return out_t[:, :b].T                             # (b, NUM_CLASSES)


def prepare_params(pt):
    """PyTorch-layout params -> kernel layouts (host-side, one-time)."""
    # torch.flatten of (B, N, P) is node-major (index n*P+p); the kernel builds
    # a p-major slab (index p*N+n), so permute fc1's input columns to match.
    fc1_pm = pt["fc1_w"].reshape(L1, N, P).transpose(0, 2, 1).reshape(L1, P * N)
    return dict(
        alpha=pt["alpha"].reshape(1, 1),
        pre_w_pm=jnp.repeat(pt["pre_w"], N, axis=1).reshape(P * N, 1),  # [p*N+n]=w[p]
        pre_b_pm=jnp.repeat(pt["pre_b"], N, axis=1).reshape(P * N, 1),
        fc1_w_pm=fc1_pm,                       # (L1, P*N), used as W @ H
        fc1_b_col=pt["fc1_b"].T,               # (L1, 1)
        fc2_w=pt["fc2_w"],                     # (L2, L1) native (out, in)
        fc2_b_col=pt["fc2_b"].T,               # (L2, 1)
        fc3_w=pt["fc3_w"],                     # (NUM_CLASSES, L2) native
        fc3_b_col=pt["fc3_b"].T,               # (NUM_CLASSES, 1)
    )


def reference(x, adj, pt):
    """Plain-JAX replica of the PyTorch forward (eval mode) for checking."""
    row_sum = adj.sum(axis=2)
    row_sum = jnp.where(row_sum != 0.0, row_sum, 1.0)
    d = row_sum ** -0.5
    norm_adj = adj * d[:, :, None] * d[:, None, :]
    m = norm_adj + pt["alpha"][0, 0] * jnp.eye(N)[None]
    y = jnp.einsum("ijk,ik->ij", m, x)
    h = _act(y[:, :, None] * pt["pre_w"][0][None, None, :] + pt["pre_b"][0])
    flat = h.reshape(x.shape[0], N * P)                # torch.flatten(start_dim=1)
    z1 = _act(flat @ pt["fc1_w"].T + pt["fc1_b"][0])
    z2 = _act(z1 @ pt["fc2_w"].T + pt["fc2_b"][0])
    z3 = z2 @ pt["fc3_w"].T + pt["fc3_b"][0]
    return jax.nn.sigmoid(z3)


if __name__ == "__main__":
    key = jax.random.PRNGKey(0)
    keys = jax.random.split(key, 12)

    def uni(k, shape, bound):
        return jax.random.uniform(k, shape, jnp.float32, -bound, bound)

    # Deterministic params mimicking nn.Linear shapes (PyTorch (out, in) layout).
    pt_params = dict(
        alpha=jax.random.uniform(keys[10], (1, 1), jnp.float32),   # torch.rand(1)
        pre_w=uni(keys[2], (1, P), 1.0),                           # Linear(1, P)
        pre_b=uni(keys[3], (1, P), 1.0),
        fc1_w=uni(keys[4], (L1, N * P), (N * P) ** -0.5),
        fc1_b=uni(keys[5], (1, L1), (N * P) ** -0.5),
        fc2_w=uni(keys[6], (L2, L1), L1 ** -0.5),
        fc2_b=uni(keys[7], (1, L2), L1 ** -0.5),
        fc3_w=uni(keys[8], (NUM_CLASSES, L2), L2 ** -0.5),
        fc3_b=uni(keys[9], (1, NUM_CLASSES), L2 ** -0.5),
    )
    kparams = prepare_params(pt_params)

    # (B=2, default tile) and (B=260, tb=128 -> grid of 3 blocks + ragged pad).
    for b_test, tb_test in ((2, None), (260, 128)):
        kx = jax.random.fold_in(keys[0], b_test)
        ka = jax.random.fold_in(keys[1], b_test)
        x = jax.random.normal(kx, (b_test, N), jnp.float32)
        adj = jax.random.uniform(ka, (b_test, N, N), jnp.float32)
        adj = 0.5 * (adj + jnp.swapaxes(adj, 1, 2))               # symmetric, >= 0
        adj = adj.at[0, 0, :].set(0.0).at[0, :, 0].set(0.0)       # zero-row branch

        out = values_and_graph_structure(x, adj, kparams, tb=tb_test)
        out = jax.block_until_ready(out)
        ref = reference(x, adj, pt_params)

        assert out.shape == (b_test, NUM_CLASSES)
        assert jnp.allclose(out, ref, atol=2e-5, rtol=1e-5), (b_test, out, ref)

    print("KERNEL_OK")
</pallas_src>

<mosaic_0001>
module attributes {stable_mosaic.version = 11 : i64} {
  func.func @_vgs_kernel(%arg0: i32, %arg1: memref<1x1xf32, #tpu.memory_space<smem>>, %arg2: memref<8x8x128xf32, #tpu.memory_space<vmem>>, %arg3: memref<8x128xf32, #tpu.memory_space<vmem>>, %arg4: memref<32x1xf32, #tpu.memory_space<vmem>>, %arg5: memref<32x1xf32, #tpu.memory_space<vmem>>, %arg6: memref<32x32xf32, #tpu.memory_space<vmem>>, %arg7: memref<32x1xf32, #tpu.memory_space<vmem>>, %arg8: memref<16x32xf32, #tpu.memory_space<vmem>>, %arg9: memref<16x1xf32, #tpu.memory_space<vmem>>, %arg10: memref<1x16xf32, #tpu.memory_space<vmem>>, %arg11: memref<1x1xf32, #tpu.memory_space<vmem>>, %arg12: memref<1x128xf32, #tpu.memory_space<vmem>>) attributes {dimension_semantics = [#tpu.dimension_semantics<parallel>], iteration_bounds = array<i64: 1>, scalar_prefetch = 0 : i64, scratch_operands = 0 : i64, tpu.core_type = #tpu.core_type<tc>, window_params = [{transform_indices = @transform_0, window_bounds = array<i64: 1, 1>}, {transform_indices = @transform_1, window_bounds = array<i64: 8, 8, 128>}, {transform_indices = @transform_2, window_bounds = array<i64: 8, 128>}, {pipeline_mode = #tpu.pipeline_mode<synchronous>, transform_indices = @transform_3, window_bounds = array<i64: 32, 1>}, {pipeline_mode = #tpu.pipeline_mode<synchronous>, transform_indices = @transform_4, window_bounds = array<i64: 32, 1>}, {pipeline_mode = #tpu.pipeline_mode<synchronous>, transform_indices = @transform_5, window_bounds = array<i64: 32, 32>}, {pipeline_mode = #tpu.pipeline_mode<synchronous>, transform_indices = @transform_6, window_bounds = array<i64: 32, 1>}, {pipeline_mode = #tpu.pipeline_mode<synchronous>, transform_indices = @transform_7, window_bounds = array<i64: 16, 32>}, {pipeline_mode = #tpu.pipeline_mode<synchronous>, transform_indices = @transform_8, window_bounds = array<i64: 16, 1>}, {pipeline_mode = #tpu.pipeline_mode<synchronous>, transform_indices = @transform_9, window_bounds = array<i64: 1, 16>}, {pipeline_mode = #tpu.pipeline_mode<synchronous>, transform_indices = @transform_10, window_bounds = array<i64: 1, 1>}, {transform_indices = @transform_11, window_bounds = array<i64: 1, 128>}]} {
    %c0 = arith.constant 0 : index
    %c0_0 = arith.constant 0 : index
    %c0_1 = arith.constant 0 : index
    %0 = vector.load %arg2[%c0, %c0_0, %c0_1] : memref<8x8x128xf32, #tpu.memory_space<vmem>>, vector<8x8x128xf32>
    %c0_2 = arith.constant 0 : index
    %c0_3 = arith.constant 0 : index
    %1 = vector.load %arg3[%c0_2, %c0_3] : memref<8x128xf32, #tpu.memory_space<vmem>>, vector<8x128xf32>
    %c0_4 = arith.constant 0 : index
    %c0_5 = arith.constant 0 : index
    %2 = memref.load %arg1[%c0_4, %c0_5] : memref<1x1xf32, #tpu.memory_space<smem>>
    %cst = arith.constant dense<0.000000e+00> : vector<8x128xf32>
    %3 = vector.multi_reduction <add>, %0, %cst [1] : vector<8x8x128xf32> to vector<8x128xf32>
    %cst_6 = arith.constant 0.000000e+00 : f32
    %4 = vector.broadcast %cst_6 : f32 to vector<8x128xf32>
    %5 = arith.cmpf one, %3, %4 : vector<8x128xf32>
    %cst_7 = arith.constant 1.000000e+00 : f32
    %6 = vector.broadcast %cst_7 : f32 to vector<8x128xf32>
    %7 = arith.select %5, %3, %6 : vector<8x128xi1>, vector<8x128xf32>
    %8 = math.rsqrt %7 : vector<8x128xf32>
    %9 = vector.shape_cast %8 : vector<8x128xf32> to vector<8x1x128xf32>
    %10 = vector.broadcast %9 : vector<8x1x128xf32> to vector<8x8x128xf32>
    %11 = arith.mulf %0, %10 : vector<8x8x128xf32>
    %12 = vector.shape_cast %8 : vector<8x128xf32> to vector<1x8x128xf32>
    %13 = vector.broadcast %12 : vector<1x8x128xf32> to vector<8x8x128xf32>
    %14 = arith.mulf %11, %13 : vector<8x8x128xf32>
    %15 = vector.shape_cast %1 : vector<8x128xf32> to vector<1x8x128xf32>
    %16 = vector.broadcast %15 : vector<1x8x128xf32> to vector<8x8x128xf32>
    %17 = arith.mulf %14, %16 : vector<8x8x128xf32>
    %cst_8 = arith.constant dense<0.000000e+00> : vector<8x128xf32>
    %18 = vector.multi_reduction <add>, %17, %cst_8 [1] : vector<8x8x128xf32> to vector<8x128xf32>
    %19 = vector.broadcast %2 : f32 to vector<8x128xf32>
    %20 = arith.mulf %19, %1 : vector<8x128xf32>
    %21 = arith.addf %18, %20 : vector<8x128xf32>
    %22 = tpu.concatenate %21, %21, %21, %21 in 0 : vector<8x128xf32>, vector<8x128xf32>, vector<8x128xf32>, vector<8x128xf32> -> vector<32x128xf32>
    %c0_9 = arith.constant 0 : index
    %c0_10 = arith.constant 0 : index
    %23 = vector.load %arg4[%c0_9, %c0_10] : memref<32x1xf32, #tpu.memory_space<vmem>>, vector<32x1xf32>
    %24 = vector.broadcast %23 : vector<32x1xf32> to vector<32x128xf32>
    %25 = arith.mulf %22, %24 : vector<32x128xf32>
    %c0_11 = arith.constant 0 : index
    %c0_12 = arith.constant 0 : index
    %26 = vector.load %arg5[%c0_11, %c0_12] : memref<32x1xf32, #tpu.memory_space<vmem>>, vector<32x1xf32>
    %27 = vector.broadcast %26 : vector<32x1xf32> to vector<32x128xf32>
    %28 = arith.addf %25, %27 : vector<32x128xf32>
    %cst_13 = arith.constant 0.000000e+00 : f32
    %29 = vector.broadcast %cst_13 : f32 to vector<32x128xf32>
    %30 = arith.maximumf %28, %29 : vector<32x128xf32>
    %c0_14 = arith.constant 0 : index
    %c0_15 = arith.constant 0 : index
    %31 = vector.load %arg6[%c0_14, %c0_15] : memref<32x32xf32, #tpu.memory_space<vmem>>, vector<32x32xf32>
    %cst_16 = arith.constant dense<0.000000e+00> : vector<32x128xf32>
    %32 = tpu.matmul %31, %30, %cst_16 {dimension_numbers = #tpu.dot_dimension_numbers<[1], [0], [0], [1], [0, 0, 1, 1], [], []>} : vector<32x32xf32>, vector<32x128xf32>, vector<32x128xf32> -> vector<32x128xf32>
    %c0_17 = arith.constant 0 : index
    %c0_18 = arith.constant 0 : index
    %33 = vector.load %arg7[%c0_17, %c0_18] : memref<32x1xf32, #tpu.memory_space<vmem>>, vector<32x1xf32>
    %34 = vector.broadcast %33 : vector<32x1xf32> to vector<32x128xf32>
    %35 = arith.addf %32, %34 : vector<32x128xf32>
    %cst_19 = arith.constant 0.000000e+00 : f32
    %36 = vector.broadcast %cst_19 : f32 to vector<32x128xf32>
    %37 = arith.maximumf %35, %36 : vector<32x128xf32>
    %c0_20 = arith.constant 0 : index
    %c0_21 = arith.constant 0 : index
    %38 = vector.load %arg8[%c0_20, %c0_21] : memref<16x32xf32, #tpu.memory_space<vmem>>, vector<16x32xf32>
    %cst_22 = arith.constant dense<0.000000e+00> : vector<16x128xf32>
    %39 = tpu.matmul %38, %37, %cst_22 {dimension_numbers = #tpu.dot_dimension_numbers<[1], [0], [0], [1], [0, 0, 1, 1], [], []>} : vector<16x32xf32>, vector<32x128xf32>, vector<16x128xf32> -> vector<16x128xf32>
    %c0_23 = arith.constant 0 : index
    %c0_24 = arith.constant 0 : index
    %40 = vector.load %arg9[%c0_23, %c0_24] : memref<16x1xf32, #tpu.memory_space<vmem>>, vector<16x1xf32>
    %41 = vector.broadcast %40 : vector<16x1xf32> to vector<16x128xf32>
    %42 = arith.addf %39, %41 : vector<16x128xf32>
    %cst_25 = arith.constant 0.000000e+00 : f32
    %43 = vector.broadcast %cst_25 : f32 to vector<16x128xf32>
    %44 = arith.maximumf %42, %43 : vector<16x128xf32>
    %c0_26 = arith.constant 0 : index
    %c0_27 = arith.constant 0 : index
    %45 = vector.load %arg10[%c0_26, %c0_27] : memref<1x16xf32, #tpu.memory_space<vmem>>, vector<1x16xf32>
    %cst_28 = arith.constant dense<0.000000e+00> : vector<1x128xf32>
    %46 = tpu.matmul %45, %44, %cst_28 {dimension_numbers = #tpu.dot_dimension_numbers<[1], [0], [0], [1], [0, 0, 1, 1], [], []>} : vector<1x16xf32>, vector<16x128xf32>, vector<1x128xf32> -> vector<1x128xf32>
    %c0_29 = arith.constant 0 : index
    %c0_30 = arith.constant 0 : index
    %47 = vector.load %arg11[%c0_29, %c0_30] : memref<1x1xf32, #tpu.memory_space<vmem>>, vector<1x1xf32>
    %48 = vector.broadcast %47 : vector<1x1xf32> to vector<1x128xf32>
    %49 = arith.addf %46, %48 : vector<1x128xf32>
    %50 = arith.negf %49 : vector<1x128xf32>
    %51 = math.exp %50 : vector<1x128xf32>
    %cst_31 = arith.constant 1.000000e+00 : f32
    %52 = vector.broadcast %cst_31 : f32 to vector<1x128xf32>
    %53 = arith.addf %52, %51 : vector<1x128xf32>
    %54 = arith.divf %52, %53 : vector<1x128xf32>
    %c0_32 = arith.constant 0 : index
    %c0_33 = arith.constant 0 : index
    %55 = vector.load %arg12[%c0_32, %c0_33] : memref<1x128xf32, #tpu.memory_space<vmem>>, vector<1x128xf32>
    tpu.vector_store %arg12[%c0_32, %c0_33], %54 {strides = array<i32>} : memref<1x128xf32, #tpu.memory_space<vmem>>, vector<1x128xf32>,
    return
  }
  func.func @transform_0(%arg0: i32) -> (i32, i32) {
    %c0_i32 = arith.constant 0 : i32
    %c0_i32_0 = arith.constant 0 : i32
    %c0_i32_1 = arith.constant 0 : i32
    return %c0_i32, %c0_i32_0 : i32, i32
  }
  func.func @transform_1(%arg0: i32) -> (i32, i32, i32) {
    %c0_i32 = arith.constant 0 : i32
    %c0_i32_0 = arith.constant 0 : i32
    %c0_i32_1 = arith.constant 0 : i32
    return %c0_i32, %c0_i32_0, %arg0 : i32, i32, i32
  }
  func.func @transform_2(%arg0: i32) -> (i32, i32) {
    %c0_i32 = arith.constant 0 : i32
    %c0_i32_0 = arith.constant 0 : i32
    return %c0_i32, %arg0 : i32, i32
  }
  func.func @transform_3(%arg0: i32) -> (i32, i32) {
    %c0_i32 = arith.constant 0 : i32
    %c0_i32_0 = arith.constant 0 : i32
    %c0_i32_1 = arith.constant 0 : i32
    return %c0_i32, %c0_i32_0 : i32, i32
  }
  func.func @transform_4(%arg0: i32) -> (i32, i32) {
    %c0_i32 = arith.constant 0 : i32
    %c0_i32_0 = arith.constant 0 : i32
    %c0_i32_1 = arith.constant 0 : i32
    return %c0_i32, %c0_i32_0 : i32, i32
  }
  func.func @transform_5(%arg0: i32) -> (i32, i32) {
    %c0_i32 = arith.constant 0 : i32
    %c0_i32_0 = arith.constant 0 : i32
    %c0_i32_1 = arith.constant 0 : i32
    return %c0_i32, %c0_i32_0 : i32, i32
  }
  func.func @transform_6(%arg0: i32) -> (i32, i32) {
    %c0_i32 = arith.constant 0 : i32
    %c0_i32_0 = arith.constant 0 : i32
    %c0_i32_1 = arith.constant 0 : i32
    return %c0_i32, %c0_i32_0 : i32, i32
  }
  func.func @transform_7(%arg0: i32) -> (i32, i32) {
    %c0_i32 = arith.constant 0 : i32
    %c0_i32_0 = arith.constant 0 : i32
    %c0_i32_1 = arith.constant 0 : i32
    return %c0_i32, %c0_i32_0 : i32, i32
  }
  func.func @transform_8(%arg0: i32) -> (i32, i32) {
    %c0_i32 = arith.constant 0 : i32
    %c0_i32_0 = arith.constant 0 : i32
    %c0_i32_1 = arith.constant 0 : i32
    return %c0_i32, %c0_i32_0 : i32, i32
  }
  func.func @transform_9(%arg0: i32) -> (i32, i32) {
    %c0_i32 = arith.constant 0 : i32
    %c0_i32_0 = arith.constant 0 : i32
    %c0_i32_1 = arith.constant 0 : i32
    return %c0_i32, %c0_i32_0 : i32, i32
  }
  func.func @transform_10(%arg0: i32) -> (i32, i32) {
    %c0_i32 = arith.constant 0 : i32
    %c0_i32_0 = arith.constant 0 : i32
    %c0_i32_1 = arith.constant 0 : i32
    return %c0_i32, %c0_i32_0 : i32, i32
  }
  func.func @transform_11(%arg0: i32) -> (i32, i32) {
    %c0_i32 = arith.constant 0 : i32
    %c0_i32_0 = arith.constant 0 : i32
    return %c0_i32, %arg0 : i32, i32
  }
}

</mosaic_0001>

<llo_original>
// kernel: tpu_custom_call.1
$region0: #{tpu_custom_call.1}
  #allocation0 [shape = 'u32[]', space=smem, size = 0x4, offset = 0x4, fixed_abs, tag = 'smem constant byte address 0x4 - core index']
  #allocation1 [shape = 'u32[144,128]{1,0:T(1,128)}', space=vmem, size = 0x12000, scoped, tag = 'internal scratch']
  #allocation2 [shape = 'f32[1,1]{1,0:T(1,128)S(6)}', space=smem, size = 0x200, scoped, tag = 'scoped memory for tpu_custom_call.1']
  #allocation3 [shape = 'f32[1,1]{1,0:T(1,128)S(1)}', space=vmem, size = 0x200, scoped, tag = 'scoped memory for tpu_custom_call.1']
  %s0 = inlined_call_operand.<no memory space> [shape: f32[1,1], index: 0, kind: input, shape index: {}]
  %s1 = inlined_call_operand.vmem [shape: f32[8,8,128], index: 1, kind: input, shape index: {}]
  %s2 = inlined_call_operand.vmem [shape: f32[8,128], index: 2, kind: input, shape index: {}]
  %s3 = inlined_call_operand.vmem [shape: f32[32,1], index: 3, kind: input, shape index: {}]
  %s4 = inlined_call_operand.vmem [shape: f32[32,1], index: 4, kind: input, shape index: {}]
  %s5 = inlined_call_operand.vmem [shape: f32[32,32], index: 5, kind: input, shape index: {}]
  %s6 = inlined_call_operand.vmem [shape: f32[32,1], index: 6, kind: input, shape index: {}]
  %s7 = inlined_call_operand.vmem [shape: f32[16,32], index: 7, kind: input, shape index: {}]
  %s8 = inlined_call_operand.vmem [shape: f32[16,1], index: 8, kind: input, shape index: {}]
  %s9 = inlined_call_operand.vmem [shape: f32[1,16], index: 9, kind: input, shape index: {}]
  %s10 = inlined_call_operand.<no memory space> [shape: f32[1,1], index: 10, kind: input, shape index: {}]
  %s11 = inlined_call_operand.hbm [shape: f32[1,128], index: 11, kind: output, shape index: {}]
  %s12 = sld [smem:[#allocation0]]
  $region54: #{tpu_custom_call.1} parent=0
    _
  %s14 = ssub.s32 1, %s12
  %s15 = scalar_select 0, %s14, %s12
  %16 = sst [smem:[#allocation2]] %s0
  %v17 = vstv %s10
  %18 = vst [vmem:[#allocation3] sm:$0x1] %v17
  $region1: #{tpu_custom_call.1} parent=0
    #allocation4 [shape = 'u8[512]{0}', space=vmem, size = 0x400, scoped, tag = 'output window, operand 0, single buffered']
    #allocation5 [shape = 's32[1]{0}', space=sflag, size = 0x4, scoped, tag = 'scoped memory for tpu_custom_call.1']
    %19 = vsyncpa [#allocation5], 0
    // Predicated region
    $region2: #{tpu_custom_call.1} parent=1 // pred_check
      _
    $region3: #{tpu_custom_call.1} parent=1 // pred_check_branch
      %21 = sbr.rel (0) target = $region5
    $region4: #{tpu_custom_call.1} parent=1 // pred_region
      _
    $region5: #{tpu_custom_call.1} parent=1 // pred_fallthru
      _
    // Predicated region
    $region6: #{tpu_custom_call.1} parent=1 // pred_check
      _
    $region7: #{tpu_custom_call.1} parent=1 // pred_check_branch
      %23 = sbr.rel (0) target = $region9
    $region8: #{tpu_custom_call.1} parent=1 // pred_region
      _
    $region9: #{tpu_custom_call.1} parent=1 // pred_fallthru
      _
    // Predicated region
    $region10: #{tpu_custom_call.1} parent=1 // pred_check
      _
    $region11: #{tpu_custom_call.1} parent=1 // pred_check_branch
      %25 = sbr.rel (0) target = $region13
    $region12: #{tpu_custom_call.1} parent=1 // pred_region
      _
    $region13: #{tpu_custom_call.1} parent=1 // pred_fallthru
      _
    // Predicated region
    $region14: #{tpu_custom_call.1} parent=1 // pred_check
      _
    $region15: #{tpu_custom_call.1} parent=1 // pred_check_branch
      %27 = sbr.rel (0) target = $region17
    $region16: #{tpu_custom_call.1} parent=1 // pred_region
      _
    $region17: #{tpu_custom_call.1} parent=1 // pred_fallthru
      _
    // Predicated region
    $region18: #{tpu_custom_call.1} parent=1 // pred_check
      _
    $region19: #{tpu_custom_call.1} parent=1 // pred_check_branch
      %29 = sbr.rel (0) target = $region21
    $region20: #{tpu_custom_call.1} parent=1 // pred_region
      _
    $region21: #{tpu_custom_call.1} parent=1 // pred_fallthru
      _
    // Predicated region
    $region22: #{tpu_custom_call.1} parent=1 // pred_check
      _
    $region23: #{tpu_custom_call.1} parent=1 // pred_check_branch
      %31 = sbr.rel (0) target = $region25
    $region24: #{tpu_custom_call.1} parent=1 // pred_region
      _
    $region25: #{tpu_custom_call.1} parent=1 // pred_fallthru
      _
    // Predicated region
    $region26: #{tpu_custom_call.1} parent=1 // pred_check
      _
    $region27: #{tpu_custom_call.1} parent=1 // pred_check_branch
      %33 = sbr.rel (0) target = $region29
    $region28: #{tpu_custom_call.1} parent=1 // pred_region
      _
    $region29: #{tpu_custom_call.1} parent=1 // pred_fallthru
      _
    // Predicated region
    $region30: #{tpu_custom_call.1} parent=1 // pred_check
      _
    $region31: #{tpu_custom_call.1} parent=1 // pred_check_branch
      %35 = sbr.rel (0) target = $region33
    $region32: #{tpu_custom_call.1} parent=1 // pred_region
      _
    $region33: #{tpu_custom_call.1} parent=1 // pred_fallthru
      _
    // Predicated region
    $region34: #{tpu_custom_call.1} parent=1 // pred_check
      _
    $region35: #{tpu_custom_call.1} parent=1 // pred_check_branch
      %37 = sbr.rel (0) target = $region37
    $region36: #{tpu_custom_call.1} parent=1 // pred_region
      _
    $region37: #{tpu_custom_call.1} parent=1 // pred_fallthru
      _
    // Predicated region
    $region38: #{tpu_custom_call.1} parent=1 // pred_check
      _
    $region39: #{tpu_custom_call.1} parent=1 // pred_check_branch
      %39 = sbr.rel (0) target = $region41
    $region40: #{tpu_custom_call.1} parent=1 // pred_region
      _
    $region41: #{tpu_custom_call.1} parent=1 // pred_fallthru
      _
    // Predicated region
    $region42: #{tpu_custom_call.1} parent=1 // pred_check
      _
    $region43: #{tpu_custom_call.1} parent=1 // pred_check_branch
      %41 = sbr.rel (0) target = $region45
    $region44: #{tpu_custom_call.1} parent=1 // pred_region
      _
    $region45: #{tpu_custom_call.1} parent=1 // pred_fallthru
      _
    %v42 = vld [vmem:[%s1] sm:$0xff]
    %v43 = vld [vmem:[%s1 + $0x8] sm:$0xff]
    %v44 = vld [vmem:[%s1 + $0x10] sm:$0xff]
    %v45 = vld [vmem:[%s1 + $0x18] sm:$0xff]
    %v46 = vld [vmem:[%s1 + $0x20] sm:$0xff]
    %v47 = vld [vmem:[%s1 + $0x28] sm:$0xff]
    %v48 = vld [vmem:[%s1 + $0x30] sm:$0xff]
    %v49 = vld [vmem:[%s1 + $0x38] sm:$0xff]
    %v50 = vld [vmem:[%s2] sm:$0xff]
    %s51 = sld [smem:[#allocation2]]
    %v52 = vrot.slane %v42, 4
    %v53 = vadd.f32 %v42, %v52
    %v54 = vrot.slane %v53, 2
    %v55 = vadd.f32 %v53, %v54
    %v56 = vrot.slane %v55, 1
    %v57 = vadd.f32 %v55, %v56
    %v58 = vrot.slane %v43, 4
    %v59 = vadd.f32 %v43, %v58
    %v60 = vrot.slane %v59, 2
    %v61 = vadd.f32 %v59, %v60
    %v62 = vrot.slane %v61, 1
    %v63 = vadd.f32 %v61, %v62
    %v64 = vrot.slane %v44, 4
    %v65 = vadd.f32 %v44, %v64
    %v66 = vrot.slane %v65, 2
    %v67 = vadd.f32 %v65, %v66
    %v68 = vrot.slane %v67, 1
    %v69 = vadd.f32 %v67, %v68
    %v70 = vrot.slane %v45, 4
    %v71 = vadd.f32 %v45, %v70
    %v72 = vrot.slane %v71, 2
    %v73 = vadd.f32 %v71, %v72
    %v74 = vrot.slane %v73, 1
    %v75 = vadd.f32 %v73, %v74
    %v76 = vrot.slane %v46, 4
    %v77 = vadd.f32 %v46, %v76
    %v78 = vrot.slane %v77, 2
    %v79 = vadd.f32 %v77, %v78
    %v80 = vrot.slane %v79, 1
    %v81 = vadd.f32 %v79, %v80
    %v82 = vrot.slane %v47, 4
    %v83 = vadd.f32 %v47, %v82
    %v84 = vrot.slane %v83, 2
    %v85 = vadd.f32 %v83, %v84
    %v86 = vrot.slane %v85, 1
    %v87 = vadd.f32 %v85, %v86
    %v88 = vrot.slane %v48, 4
    %v89 = vadd.f32 %v48, %v88
    %v90 = vrot.slane %v89, 2
    %v91 = vadd.f32 %v89, %v90
    %v92 = vrot.slane %v91, 1
    %v93 = vadd.f32 %v91, %v92
    %v94 = vrot.slane %v49, 4
    %v95 = vadd.f32 %v49, %v94
    %v96 = vrot.slane %v95, 2
    %v97 = vadd.f32 %v95, %v96
    %v98 = vrot.slane %v97, 1
    %v99 = vadd.f32 %v97, %v98
    %vm100 = vcmp.ne.f32.partialorder %v57, 0.0
    %vm101 = vcmp.ne.f32.partialorder %v63, 0.0
    %vm102 = vcmp.ne.f32.partialorder %v69, 0.0
    %vm103 = vcmp.ne.f32.partialorder %v75, 0.0
    %vm104 = vcmp.ne.f32.partialorder %v81, 0.0
    %vm105 = vcmp.ne.f32.partialorder %v87, 0.0
    %vm106 = vcmp.ne.f32.partialorder %v93, 0.0
    %vm107 = vcmp.ne.f32.partialorder %v99, 0.0
    %v108 = vsel %vm100, %v57, 1.0
    %v109 = vsel %vm101, %v63, 1.0
    %v110 = vsel %vm102, %v69, 1.0
    %v111 = vsel %vm103, %v75, 1.0
    %v112 = vsel %vm104, %v81, 1.0
    %v113 = vsel %vm105, %v87, 1.0
    %v114 = vsel %vm106, %v93, 1.0
    %v115 = vsel %vm107, %v99, 1.0
    %v116 = vrsqrt.pop %v108
    %v117 = vrsqrt.pop %v109
    %v118 = vrsqrt.pop %v110
    %v119 = vrsqrt.pop %v111
    %v120 = vrsqrt.pop %v112
    %v121 = vrsqrt.pop %v113
    %v122 = vrsqrt.pop %v114
    %v123 = vrsqrt.pop %v115
    %v124 = vmul.f32 %v42, %v116
    %v125 = vmul.f32 %v43, %v117
    %v126 = vmul.f32 %v44, %v118
    %v127 = vmul.f32 %v45, %v119
    %v128 = vmul.f32 %v46, %v120
    %v129 = vmul.f32 %v47, %v121
    %v130 = vmul.f32 %v48, %v122
    %v131 = vmul.f32 %v49, %v123
    %vm140 = vcmask 1041409
    %v141 = vsel %vm140, %v117, %v116
    %vm142 = vcmask 1042434
    %v143 = vsel %vm142, %v118, %v141
    %vm144 = vcmask 1043459
    %v145 = vsel %vm144, %v119, %v143
    %vm146 = vcmask 1044484
    %v147 = vsel %vm146, %v120, %v145
    %vm148 = vcmask 1045509
    %v149 = vsel %vm148, %v121, %v147
    %vm150 = vcmask 1046534
    %v151 = vsel %vm150, %v122, %v149
    %vm152 = vcmask 1047559
    %v153 = vsel %vm152, %v123, %v151
    %v155 = vmul.f32 %v124, %v153
    %v156 = vmul.f32 %v125, %v153
    %v157 = vmul.f32 %v126, %v153
    %v158 = vmul.f32 %v127, %v153
    %v159 = vmul.f32 %v128, %v153
    %v160 = vmul.f32 %v129, %v153
    %v161 = vmul.f32 %v130, %v153
    %v162 = vmul.f32 %v131, %v153
    %v163 = vmul.f32 %v155, %v50
    %v164 = vmul.f32 %v156, %v50
    %v165 = vmul.f32 %v157, %v50
    %v166 = vmul.f32 %v158, %v50
    %v167 = vmul.f32 %v159, %v50
    %v168 = vmul.f32 %v160, %v50
    %v169 = vmul.f32 %v161, %v50
    %v170 = vmul.f32 %v162, %v50
    %v171 = vrot.slane %v163, 4
    %v172 = vadd.f32 %v163, %v171
    %v173 = vrot.slane %v172, 2
    %v174 = vadd.f32 %v172, %v173
    %v175 = vrot.slane %v174, 1
    %v176 = vadd.f32 %v174, %v175
    %v177 = vrot.slane %v164, 4
    %v178 = vadd.f32 %v164, %v177
    %v179 = vrot.slane %v178, 2
    %v180 = vadd.f32 %v178, %v179
    %v181 = vrot.slane %v180, 1
    %v182 = vadd.f32 %v180, %v181
    %v183 = vrot.slane %v165, 4
    %v184 = vadd.f32 %v165, %v183
    %v185 = vrot.slane %v184, 2
    %v186 = vadd.f32 %v184, %v185
    %v187 = vrot.slane %v186, 1
    %v188 = vadd.f32 %v186, %v187
    %v189 = vrot.slane %v166, 4
    %v190 = vadd.f32 %v166, %v189
    %v191 = vrot.slane %v190, 2
    %v192 = vadd.f32 %v190, %v191
    %v193 = vrot.slane %v192, 1
    %v194 = vadd.f32 %v192, %v193
    %v195 = vrot.slane %v167, 4
    %v196 = vadd.f32 %v167, %v195
    %v197 = vrot.slane %v196, 2
    %v198 = vadd.f32 %v196, %v197
    %v199 = vrot.slane %v198, 1
    %v200 = vadd.f32 %v198, %v199
    %v201 = vrot.slane %v168, 4
    %v202 = vadd.f32 %v168, %v201
    %v203 = vrot.slane %v202, 2
    %v204 = vadd.f32 %v202, %v203
    %v205 = vrot.slane %v204, 1
    %v206 = vadd.f32 %v204, %v205
    %v207 = vrot.slane %v169, 4
    %v208 = vadd.f32 %v169, %v207
    %v209 = vrot.slane %v208, 2
    %v210 = vadd.f32 %v208, %v209
    %v211 = vrot.slane %v210, 1
    %v212 = vadd.f32 %v210, %v211
    %v213 = vrot.slane %v170, 4
    %v214 = vadd.f32 %v170, %v213
    %v215 = vrot.slane %v214, 2
    %v216 = vadd.f32 %v214, %v215
    %v217 = vrot.slane %v216, 1
    %v218 = vadd.f32 %v216, %v217
    %v219 = vstv %s51
    %v220 = vmul.f32 %v219, %v50
    %v222 = vrot.slane %v220, 1
    %v223 = vrot.slane %v220, 2
    %v224 = vrot.slane %v220, 3
    %v225 = vrot.slane %v220, 4
    %v226 = vrot.slane %v220, 5
    %v227 = vrot.slane %v220, 6
    %v228 = vrot.slane %v220, 7
    %v237 = vadd.f32 %v176, %v220
    %v238 = vadd.f32 %v182, %v222
    %v239 = vadd.f32 %v188, %v223
    %v240 = vadd.f32 %v194, %v224
    %v241 = vadd.f32 %v200, %v225
    %v242 = vadd.f32 %v206, %v226
    %v243 = vadd.f32 %v212, %v227
    %v244 = vadd.f32 %v218, %v228
    %v253 = vrot.slane %v238, 7
    %v254 = vsel %vm140, %v253, %v237
    %v255 = vrot.slane %v239, 6
    %v256 = vsel %vm142, %v255, %v254
    %v257 = vrot.slane %v240, 5
    %v258 = vsel %vm144, %v257, %v256
    %v259 = vrot.slane %v241, 4
    %v260 = vsel %vm146, %v259, %v258
    %v261 = vrot.slane %v242, 3
    %v262 = vsel %vm148, %v261, %v260
    %v263 = vrot.slane %v243, 2
    %v264 = vsel %vm150, %v263, %v262
    %v265 = vrot.slane %v244, 1
    %v266 = vsel %vm152, %v265, %v264
    %v268 = vld [vmem:[%s3] sm:$0xff]
    %v269 = vld [vmem:[%s3 + $0x8] sm:$0xff]
    %v270 = vld [vmem:[%s3 + $0x10] sm:$0xff]
    %v271 = vld [vmem:[%s3 + $0x18] sm:$0xff]
    %273 = vset.pattern.permute.xlu0 0
    %274 = vperm.xlu0 %273, %v268
    %v275 = vpop.permute.xlu0 %274
    %278 = vset.pattern.permute.xlu0 0
    %279 = vperm.xlu0 %278, %v269
    %v280 = vpop.permute.xlu0 %279
    %283 = vset.pattern.permute.xlu0 0
    %284 = vperm.xlu0 %283, %v270
    %v285 = vpop.permute.xlu0 %284
    %288 = vset.pattern.permute.xlu0 0
    %289 = vperm.xlu0 %288, %v271
    %v290 = vpop.permute.xlu0 %289
    %v292 = vmul.f32 %v266, %v275
    %v293 = vmul.f32 %v266, %v280
    %v294 = vmul.f32 %v266, %v285
    %v295 = vmul.f32 %v266, %v290
    %v296 = vld [vmem:[%s4] sm:$0xff]
    %v297 = vld [vmem:[%s4 + $0x8] sm:$0xff]
    %v298 = vld [vmem:[%s4 + $0x10] sm:$0xff]
    %v299 = vld [vmem:[%s4 + $0x18] sm:$0xff]
    %301 = vset.pattern.permute.xlu0 0
    %302 = vperm.xlu0 %301, %v296
    %v303 = vpop.permute.xlu0 %302
    %306 = vset.pattern.permute.xlu0 0
    %307 = vperm.xlu0 %306, %v297
    %v308 = vpop.permute.xlu0 %307
    %311 = vset.pattern.permute.xlu0 0
    %312 = vperm.xlu0 %311, %v298
    %v313 = vpop.permute.xlu0 %312
    %316 = vset.pattern.permute.xlu0 0
    %317 = vperm.xlu0 %316, %v299
    %v318 = vpop.permute.xlu0 %317
    %v320 = vadd.f32 %v292, %v303
    %v321 = vadd.f32 %v293, %v308
    %v322 = vadd.f32 %v294, %v313
    %v323 = vadd.f32 %v295, %v318
    %v324 = vmax.f32 %v320, 0.0
    %v325 = vmax.f32 %v321, 0.0
    %v326 = vmax.f32 %v322, 0.0
    %v327 = vmax.f32 %v323, 0.0
    %v328 = vld [vmem:[%s5] sm:$0xff]
    %v329 = vld [vmem:[%s5 + $0x8] sm:$0xff]
    %v330 = vld [vmem:[%s5 + $0x10] sm:$0xff]
    %v331 = vld [vmem:[%s5 + $0x18] sm:$0xff]
    %v332 = vld [vmem:[%s6] sm:$0xff]
    %v333 = vld [vmem:[%s6 + $0x8] sm:$0xff]
    %v334 = vld [vmem:[%s6 + $0x10] sm:$0xff]
    %v335 = vld [vmem:[%s6 + $0x18] sm:$0xff]
    %337 = vset.pattern.permute.xlu0 0
    %338 = vperm.xlu0 %337, %v332
    %v339 = vpop.permute.xlu0 %338
    %342 = vset.pattern.permute.xlu0 0
    %343 = vperm.xlu0 %342, %v333
    %v344 = vpop.permute.xlu0 %343
    %347 = vset.pattern.permute.xlu0 0
    %348 = vperm.xlu0 %347, %v334
    %v349 = vpop.permute.xlu0 %348
    %352 = vset.pattern.permute.xlu0 0
    %353 = vperm.xlu0 %352, %v335
    %v354 = vpop.permute.xlu0 %353
    %vm356 = vcmask 261120
    %v358 = vsel %vm356, %v328, 0
    %v361 = vsel %vm356, %v329, 0
    %v364 = vsel %vm356, %v330, 0
    %v367 = vsel %vm356, %v331, 0
    %369 = vmatprep.subr.mxu0 0.0
    %370 = vmatpush1.msra.mxu0 %v324
    %371 = vmatprep.subr.mxu0 0.0
    %372 = vmatpush1.msra.mxu0 %v325
    %373 = vmatprep.subr.mxu0 0.0
    %374 = vmatpush1.msra.mxu0 %v326
    %375 = vmatprep.subr.mxu0 0.0
    %376 = vmatpush1.msra.mxu0 %v327
    %377 = vmatprep.subr.mxu0 0.0
    %378 = vmatpush1.msra.mxu0 0.0
    %379 = vmatprep.subr.mxu0 0.0
    %380 = vmatpush1.msra.mxu0 0.0
    %381 = vmatprep.subr.mxu0 0.0
    %382 = vmatpush1.msra.mxu0 0.0
    %383 = vmatprep.subr.mxu0 0.0
    %384 = vmatpush1.msra.mxu0 0.0
    %385 = vmatprep.subr.mxu0 0.0
    %386 = vmatpush1.msra.mxu0 0.0
    %387 = vmatprep.subr.mxu0 0.0
    %388 = vmatpush1.msra.mxu0 0.0
    %389 = vmatprep.subr.mxu0 0.0
    %390 = vmatpush1.msra.mxu0 0.0
    %391 = vmatprep.subr.mxu0 0.0
    %392 = vmatpush1.msra.mxu0 0.0
    %393 = vmatprep.subr.mxu0 0.0
    %394 = vmatpush1.msra.mxu0 0.0
    %395 = vmatprep.subr.mxu0 0.0
    %396 = vmatpush1.msra.mxu0 0.0
    %397 = vmatprep.subr.mxu0 0.0
    %398 = vmatpush1.msra.mxu0 0.0
    %399 = vmatprep.subr.mxu0 0.0
    %400 = vmatpush1.msra.mxu0 0.0
    %401 = vmatprep.subr.mxu0 0.0
    %402 = vmatpush1.msra.mxu0 0.0
    %403 = vmatprep.subr.mxu0 0.0
    %404 = vmatpush1.msra.mxu0 0.0
    %405 = vmatprep.subr.mxu0 0.0
    %406 = vmatpush1.msra.mxu0 0.0
    %407 = vmatprep.subr.mxu0 0.0
    %408 = vmatpush1.msra.mxu0 0.0
    %409 = vmatprep.subr.mxu0 0.0
    %410 = vmatpush1.msra.mxu0 0.0
    %411 = vmatprep.subr.mxu0 0.0
    %412 = vmatpush1.msra.mxu0 0.0
    %413 = vmatprep.subr.mxu0 0.0
    %414 = vmatpush1.msra.mxu0 0.0
    %415 = vmatprep.subr.mxu0 0.0
    %416 = vmatpush1.msra.mxu0 0.0
    %417 = vmatprep.subr.mxu0 0.0
    %418 = vmatpush1.msra.mxu0 0.0
    %419 = vmatprep.subr.mxu0 0.0
    %420 = vmatpush1.msra.mxu0 0.0
    %421 = vmatprep.subr.mxu0 0.0
    %422 = vmatpush1.msra.mxu0 0.0
    %423 = vmatprep.subr.mxu0 0.0
    %424 = vmatpush1.msra.mxu0 0.0
    %425 = vmatprep.subr.mxu0 0.0
    %426 = vmatpush1.msra.mxu0 0.0
    %427 = vmatprep.subr.mxu0 0.0
    %428 = vmatpush1.msra.mxu0 0.0
    %429 = vmatprep.subr.mxu0 0.0
    %430 = vmatpush1.msra.mxu0 0.0
    %431 = vmatprep.subr.mxu0 0.0
    %432 = vmatpush1.msra.mxu0 0.0
    %433 = vmatprep.mubr.f32.mxu0 0.0
    %434 = vmatmul.mubr.f32.gmra.mrb[0].mxu0 %v358
    %v435 = vpop.f32.mrb[0].mxu0
    %v436 = vadd.f32 %v339, %v435
    %v437 = vpop.f32.mrb[0].mxu0
    %438 = vmatprep.mubr.f32.mxu0 0.0
    %439 = vmatmul.mubr.f32.gmra.mrb[0].mxu0 %v361
    %v440 = vpop.f32.mrb[0].mxu0
    %v441 = vadd.f32 %v344, %v440
    %v442 = vpop.f32.mrb[0].mxu0
    %443 = vmatprep.mubr.f32.mxu0 0.0
    %444 = vmatmul.mubr.f32.gmra.mrb[0].mxu0 %v364
    %v445 = vpop.f32.mrb[0].mxu0
    %v446 = vadd.f32 %v349, %v445
    %v447 = vpop.f32.mrb[0].mxu0
    %448 = vmatprep.mubr.f32.mxu0 0.0
    %449 = vmatmul.mubr.f32.gmra.mrb[0].mxu0 %v367
    %v450 = vpop.f32.mrb[0].mxu0
    %v451 = vadd.f32 %v354, %v450
    %v452 = vpop.f32.mrb[0].mxu0
    %453 = vdwg.mxu0
    %v454 = vmax.f32 %v436, 0.0
    %v455 = vmax.f32 %v441, 0.0
    %v456 = vmax.f32 %v446, 0.0
    %v457 = vmax.f32 %v451, 0.0
    %v458 = vld [vmem:[%s7] sm:$0xff]
    %v459 = vld [vmem:[%s7 + $0x8] sm:$0xff]
    %v460 = vld [vmem:[%s8] sm:$0xff]
    %v461 = vld [vmem:[%s8 + $0x8] sm:$0xff]
    %463 = vset.pattern.permute.xlu0 0
    %464 = vperm.xlu0 %463, %v460
    %v465 = vpop.permute.xlu0 %464
    %468 = vset.pattern.permute.xlu0 0
    %469 = vperm.xlu0 %468, %v461
    %v470 = vpop.permute.xlu0 %469
    %v473 = vsel %vm356, %v458, 0
    %v476 = vsel %vm356, %v459, 0
    %478 = vmatprep.subr.mxu0 0.0
    %479 = vmatpush1.msra.mxu0 %v454
    %480 = vmatprep.subr.mxu0 0.0
    %481 = vmatpush1.msra.mxu0 %v455
    %482 = vmatprep.subr.mxu0 0.0
    %483 = vmatpush1.msra.mxu0 %v456
    %484 = vmatprep.subr.mxu0 0.0
    %485 = vmatpush1.msra.mxu0 %v457
    %486 = vmatprep.subr.mxu0 0.0
    %487 = vmatpush1.msra.mxu0 0.0
    %488 = vmatprep.subr.mxu0 0.0
    %489 = vmatpush1.msra.mxu0 0.0
    %490 = vmatprep.subr.mxu0 0.0
    %491 = vmatpush1.msra.mxu0 0.0
    %492 = vmatprep.subr.mxu0 0.0
    %493 = vmatpush1.msra.mxu0 0.0
    %494 = vmatprep.subr.mxu0 0.0
    %495 = vmatpush1.msra.mxu0 0.0
    %496 = vmatprep.subr.mxu0 0.0
    %497 = vmatpush1.msra.mxu0 0.0
    %498 = vmatprep.subr.mxu0 0.0
    %499 = vmatpush1.msra.mxu0 0.0
    %500 = vmatprep.subr.mxu0 0.0
    %501 = vmatpush1.msra.mxu0 0.0
    %502 = vmatprep.subr.mxu0 0.0
    %503 = vmatpush1.msra.mxu0 0.0
    %504 = vmatprep.subr.mxu0 0.0
    %505 = vmatpush1.msra.mxu0 0.0
    %506 = vmatprep.subr.mxu0 0.0
    %507 = vmatpush1.msra.mxu0 0.0
    %508 = vmatprep.subr.mxu0 0.0
    %509 = vmatpush1.msra.mxu0 0.0
    %510 = vmatprep.subr.mxu0 0.0
    %511 = vmatpush1.msra.mxu0 0.0
    %512 = vmatprep.subr.mxu0 0.0
    %513 = vmatpush1.msra.mxu0 0.0
    %514 = vmatprep.subr.mxu0 0.0
    %515 = vmatpush1.msra.mxu0 0.0
    %516 = vmatprep.subr.mxu0 0.0
    %517 = vmatpush1.msra.mxu0 0.0
    %518 = vmatprep.subr.mxu0 0.0
    %519 = vmatpush1.msra.mxu0 0.0
    %520 = vmatprep.subr.mxu0 0.0
    %521 = vmatpush1.msra.mxu0 0.0
    %522 = vmatprep.subr.mxu0 0.0
    %523 = vmatpush1.msra.mxu0 0.0
    %524 = vmatprep.subr.mxu0 0.0
    %525 = vmatpush1.msra.mxu0 0.0
    %526 = vmatprep.subr.mxu0 0.0
    %527 = vmatpush1.msra.mxu0 0.0
    %528 = vmatprep.subr.mxu0 0.0
    %529 = vmatpush1.msra.mxu0 0.0
    %530 = vmatprep.subr.mxu0 0.0
    %531 = vmatpush1.msra.mxu0 0.0
    %532 = vmatprep.subr.mxu0 0.0
    %533 = vmatpush1.msra.mxu0 0.0
    %534 = vmatprep.subr.mxu0 0.0
    %535 = vmatpush1.msra.mxu0 0.0
    %536 = vmatprep.subr.mxu0 0.0
    %537 = vmatpush1.msra.mxu0 0.0
    %538 = vmatprep.subr.mxu0 0.0
    %539 = vmatpush1.msra.mxu0 0.0
    %540 = vmatprep.subr.mxu0 0.0
    %541 = vmatpush1.msra.mxu0 0.0
    %542 = vmatprep.mubr.f32.mxu0 0.0
    %543 = vmatmul.mubr.f32.gmra.mrb[0].mxu0 %v473
    %v544 = vpop.f32.mrb[0].mxu0
    %v545 = vadd.f32 %v465, %v544
    %v546 = vpop.f32.mrb[0].mxu0
    %547 = vmatprep.mubr.f32.mxu0 0.0
    %548 = vmatmul.mubr.f32.gmra.mrb[0].mxu0 %v476
    %v549 = vpop.f32.mrb[0].mxu0
    %v550 = vadd.f32 %v470, %v549
    %v551 = vpop.f32.mrb[0].mxu0
    %552 = vdwg.mxu0
    %v553 = vmax.f32 %v545, 0.0
    %v554 = vmax.f32 %v550, 0.0
    %v555 = vld [vmem:[%s9] sm:$0x1]
    %v556 = vld [vmem:[#allocation3] sm:$0x1]
    %558 = vset.pattern.permute.xlu0 0
    %559 = vperm.xlu0 %558, %v556
    %v560 = vpop.permute.xlu0 %559
    %v562 = vlaneseq
    %v563 = vshrl.u32 %v562, 7
    %v564 = vsub.s32 0, %v563
    %v565 = vrot.slane %v560, %v564
    %vm566 = vcmask 130048
    %v568 = vsel %vm566, %v555, 0
    %570 = vmatprep.subr.mxu0 0.0
    %571 = vmatpush1.msra.mxu0 %v553
    %572 = vmatprep.subr.mxu0 0.0
    %573 = vmatpush1.msra.mxu0 %v554
    %574 = vmatprep.subr.mxu0 0.0
    %575 = vmatpush1.msra.mxu0 0.0
    %576 = vmatprep.subr.mxu0 0.0
    %577 = vmatpush1.msra.mxu0 0.0
    %578 = vmatprep.subr.mxu0 0.0
    %579 = vmatpush1.msra.mxu0 0.0
    %580 = vmatprep.subr.mxu0 0.0
    %581 = vmatpush1.msra.mxu0 0.0
    %582 = vmatprep.subr.mxu0 0.0
    %583 = vmatpush1.msra.mxu0 0.0
    %584 = vmatprep.subr.mxu0 0.0
    %585 = vmatpush1.msra.mxu0 0.0
    %586 = vmatprep.subr.mxu0 0.0
    %587 = vmatpush1.msra.mxu0 0.0
    %588 = vmatprep.subr.mxu0 0.0
    %589 = vmatpush1.msra.mxu0 0.0
    %590 = vmatprep.subr.mxu0 0.0
    %591 = vmatpush1.msra.mxu0 0.0
    %592 = vmatprep.subr.mxu0 0.0
    %593 = vmatpush1.msra.mxu0 0.0
    %594 = vmatprep.subr.mxu0 0.0
    %595 = vmatpush1.msra.mxu0 0.0
    %596 = vmatprep.subr.mxu0 0.0
    %597 = vmatpush1.msra.mxu0 0.0
    %598 = vmatprep.subr.mxu0 0.0
    %599 = vmatpush1.msra.mxu0 0.0
    %600 = vmatprep.subr.mxu0 0.0
    %601 = vmatpush1.msra.mxu0 0.0
    %602 = vmatprep.subr.mxu0 0.0
    %603 = vmatpush1.msra.mxu0 0.0
    %604 = vmatprep.subr.mxu0 0.0
    %605 = vmatpush1.msra.mxu0 0.0
    %606 = vmatprep.subr.mxu0 0.0
    %607 = vmatpush1.msra.mxu0 0.0
    %608 = vmatprep.subr.mxu0 0.0
    %609 = vmatpush1.msra.mxu0 0.0
    %610 = vmatprep.subr.mxu0 0.0
    %611 = vmatpush1.msra.mxu0 0.0
    %612 = vmatprep.subr.mxu0 0.0
    %613 = vmatpush1.msra.mxu0 0.0
    %614 = vmatprep.subr.mxu0 0.0
    %615 = vmatpush1.msra.mxu0 0.0
    %616 = vmatprep.subr.mxu0 0.0
    %617 = vmatpush1.msra.mxu0 0.0
    %618 = vmatprep.subr.mxu0 0.0
    %619 = vmatpush1.msra.mxu0 0.0
    %620 = vmatprep.subr.mxu0 0.0
    %621 = vmatpush1.msra.mxu0 0.0
    %622 = vmatprep.subr.mxu0 0.0
    %623 = vmatpush1.msra.mxu0 0.0
    %624 = vmatprep.subr.mxu0 0.0
    %625 = vmatpush1.msra.mxu0 0.0
    %626 = vmatprep.subr.mxu0 0.0
    %627 = vmatpush1.msra.mxu0 0.0
    %628 = vmatprep.subr.mxu0 0.0
    %629 = vmatpush1.msra.mxu0 0.0
    %630 = vmatprep.subr.mxu0 0.0
    %631 = vmatpush1.msra.mxu0 0.0
    %632 = vmatprep.subr.mxu0 0.0
    %633 = vmatpush1.msra.mxu0 0.0
    %634 = vmatprep.mubr.f32.mxu0 0.0
    %635 = vmatmul.mubr.f32.gmra.mrb[0].mxu0 %v568
    %v636 = vpop.f32.mrb[0].mxu0
    %v637 = vadd.f32 %v565, %v636
    %v638 = vpop.f32.mrb[0].mxu0
    %639 = vdwg.mxu0
    %v640 = vxor.u32 %v637, 2147483648
    %v641 = vmul.f32 %v640, 1.442695
    %v642 = vpow.pop %v641
    %v643 = vadd.f32 %v642, 1.0
    %v644 = vrcp.pop %v643
    %v645 = vmul.f32 1.0, %v644
    %646 = vst [vmem:[#allocation4] sm:$0x1] %v645
    // Predicated region
    $region46: #{tpu_custom_call.1} parent=1 // pred_check
      _
    $region47: #{tpu_custom_call.1} parent=1 // pred_check_branch
      %648 = sbr.rel (0) target = $region49
    $region48: #{tpu_custom_call.1} parent=1 // pred_region
      %s650 = ssub.s32 16, 16
      %651 = vsyncadd [#allocation5], %s650
      %s653 = sshll.u32 [#allocation4], 4
      %s654 = int_to_ptr.vmem [resolvable:$true] %s653
      %656 = dma.vmem_to_hbm [thread:$0]  %s654, 16, %s11, [#allocation5]
    $region49: #{tpu_custom_call.1} parent=1 // pred_fallthru
      _
    // Predicated region
    $region50: #{tpu_custom_call.1} parent=1 // pred_check
      _
    $region51: #{tpu_custom_call.1} parent=1 // pred_check_branch
      %658 = sbr.rel (0) target = $region53
    $region52: #{tpu_custom_call.1} parent=1 // pred_region
      %659 = dma.done [#allocation5], 16
    $region53: #{tpu_custom_call.1} parent=1 // pred_fallthru
      _
    %660 = vsyncpa [#allocation5], 1

</llo_original>
